<compile_context>
chip_gen: v7x
topology: tpu7x:2x2x1
jax: 0.10.0
libtpu: 0.0.40
codegen_flags: <defaults>
</compile_context>

<pallas_src>
import jax
import jax.numpy as jnp
from jax.experimental import pallas as pl
from jax.experimental.pallas import tpu as pltpu


def _round_up(n, m):
    return ((n + m - 1) // m) * m


def _pad2(a, rows, cols):
    out = jnp.zeros((rows, cols), a.dtype)
    return out.at[: a.shape[0], : a.shape[1]].set(a)


def mlp_kernel(x_ref, w1_ref, wh_ref, w5_ref, bh_ref, b5_ref, o_ref):
    # x_ref: (TM, Kp) bf16.  Weights bf16, biases f32, accumulation f32 on MXU.
    h = x_ref[...]

    # Layer 1
    a = jnp.dot(h, w1_ref[...], preferred_element_type=jnp.float32) + bh_ref[0]
    h = jnp.maximum(a, 0.0).astype(jnp.bfloat16)

    # Layers 2-4 (same (Hp, Hp) shape, packed along leading axis)
    for l in range(3):
        a = jnp.dot(h, wh_ref[l], preferred_element_type=jnp.float32) + bh_ref[l + 1]
        h = jnp.maximum(a, 0.0).astype(jnp.bfloat16)

    # Layer 5 (no ReLU)
    o_ref[...] = (
        jnp.dot(h, w5_ref[...], preferred_element_type=jnp.float32) + b5_ref[...]
    ).astype(o_ref.dtype)


def mlp_forward(x, params, *, tile_m=128):
    """x: (B, input_size) f32; params: 5 pairs of (W (in,out), b (1,out))."""
    B, K = x.shape
    H = params[0][0].shape[1]
    O = params[-1][0].shape[1]

    # Lane-pad every feature dim to 128; pad batch to the tile size.
    Kp = _round_up(K, 128)
    Hp = _round_up(H, 128)
    Op = _round_up(O, 128)
    Bp = _round_up(B, tile_m)

    # Padded, packed, bf16 weights (zero padding keeps the math exact: padded
    # inputs/hidden units are 0 and padded weight rows/cols are 0).
    xp = jnp.zeros((Bp, Kp), jnp.bfloat16).at[:B, :K].set(x.astype(jnp.bfloat16))
    w1p = _pad2(params[0][0], Kp, Hp).astype(jnp.bfloat16)                       # (Kp, Hp)
    whp = jnp.stack([_pad2(params[i][0], Hp, Hp) for i in (1, 2, 3)]).astype(jnp.bfloat16)  # (3, Hp, Hp)
    w5p = _pad2(params[4][0], Hp, Op).astype(jnp.bfloat16)                       # (Hp, Op)
    bhp = jnp.stack([_pad2(params[i][1], 1, Hp) for i in (0, 1, 2, 3)]).astype(jnp.float32)  # (4, 1, Hp)
    b5p = _pad2(params[4][1], 1, Op).astype(jnp.float32)                         # (1, Op)

    grid = (Bp // tile_m,)

    const2 = lambda shape: pl.BlockSpec(shape, lambda i: (0, 0))
    const3 = lambda shape: pl.BlockSpec(shape, lambda i: (0, 0, 0))

    in_specs = [
        pl.BlockSpec((tile_m, Kp), lambda i: (i, 0)),   # x: batch-tiled
        const2((Kp, Hp)),                               # W1 (resident)
        const3((3, Hp, Hp)),                            # W2..W4 (resident)
        const2((Hp, Op)),                               # W5 (resident)
        const3((4, 1, Hp)),                             # b1..b4 (resident)
        const2((1, Op)),                                # b5 (resident)
    ]
    out_spec = pl.BlockSpec((tile_m, Op), lambda i: (i, 0))

    # VMEM audit: resident weights (bf16) + biases (f32) + double-buffered x/out tiles.
    resident_bytes = 2 * (w1p.size + whp.size + w5p.size) + 4 * (bhp.size + b5p.size)
    buffered_bytes = 2 * (tile_m * Kp * 2 + tile_m * Op * 4)
    vmem_needed = resident_bytes + buffered_bytes
    cp_kwargs = dict(dimension_semantics=("parallel",))
    if vmem_needed > 30 * 1024 * 1024:
        # Raise the 32 MiB scoped default; keep headroom below v7x's 64 MiB VMEM.
        cp_kwargs["vmem_limit_bytes"] = min(vmem_needed + (8 << 20), 60 * 1024 * 1024)

    out_padded = pl.pallas_call(
        mlp_kernel,
        out_shape=jax.ShapeDtypeStruct((Bp, Op), jnp.float32),
        grid_spec=pltpu.PrefetchScalarGridSpec(
            num_scalar_prefetch=0,
            grid=grid,
            in_specs=in_specs,
            out_specs=out_spec,
        ),
        compiler_params=pltpu.CompilerParams(**cp_kwargs),
    )(xp, w1p, whp, w5p, bhp, b5p)

    return out_padded[:B, :O]


def init_linear_params(key, in_features, out_features):
    # Mirror PyTorch nn.Linear default init: U(-1/sqrt(fan_in), +1/sqrt(fan_in)).
    kw, kb = jax.random.split(key)
    bound = 1.0 / jnp.sqrt(jnp.float32(in_features))
    # Stored pre-transposed: (in, out) so the kernel computes h @ W (PyTorch does x @ W.T).
    w = jax.random.uniform(kw, (in_features, out_features), jnp.float32, -bound, bound)
    b = jax.random.uniform(kb, (1, out_features), jnp.float32, -bound, bound)
    return w, b


def build_mlp_params(key, input_size, hidden_size, output_size):
    dims = [(input_size, hidden_size),
            (hidden_size, hidden_size),
            (hidden_size, hidden_size),
            (hidden_size, hidden_size),
            (hidden_size, output_size)]
    keys = jax.random.split(key, len(dims))
    return [init_linear_params(k, fi, fo) for k, (fi, fo) in zip(keys, dims)]


def mlp_reference(x, params):
    h = x
    for i, (w, b) in enumerate(params):
        h = h @ w + b
        if i < len(params) - 1:
            h = jnp.maximum(h, 0.0)
    return h


if __name__ == "__main__":
    key = jax.random.PRNGKey(0)
    k_x, k_p = jax.random.split(key)

    batch = 8
    input_size = 32
    hidden_size = 32
    output_size = 16

    x = jax.random.normal(k_x, (batch, input_size), jnp.float32)
    params = build_mlp_params(k_p, input_size, hidden_size, output_size)

    out = mlp_forward(x, params)
    out = jax.block_until_ready(out)

    ref = mlp_reference(x, params)
    assert out.shape == (batch, output_size)
    # bf16 MXU inputs with f32 accumulation -> ~1e-2-level agreement vs the f32 reference.
    assert jnp.allclose(out, ref, atol=5e-2, rtol=5e-2), "mismatch vs JAX reference"

    print("KERNEL_OK")
</pallas_src>

<mosaic_0001>
module attributes {stable_mosaic.version = 11 : i64} {
  func.func @mlp_kernel(%arg0: i32, %arg1: memref<128x128xbf16, #tpu.memory_space<vmem>>, %arg2: memref<128x128xbf16, #tpu.memory_space<vmem>>, %arg3: memref<3x128x128xbf16, #tpu.memory_space<vmem>>, %arg4: memref<128x128xbf16, #tpu.memory_space<vmem>>, %arg5: memref<4x1x128xf32, #tpu.memory_space<vmem>>, %arg6: memref<1x128xf32, #tpu.memory_space<vmem>>, %arg7: memref<128x128xf32, #tpu.memory_space<vmem>>) attributes {dimension_semantics = [#tpu.dimension_semantics<parallel>], iteration_bounds = array<i64: 1>, scalar_prefetch = 0 : i64, scratch_operands = 0 : i64, tpu.core_type = #tpu.core_type<tc>, window_params = [{transform_indices = @transform_0, window_bounds = array<i64: 128, 128>}, {pipeline_mode = #tpu.pipeline_mode<synchronous>, transform_indices = @transform_1, window_bounds = array<i64: 128, 128>}, {pipeline_mode = #tpu.pipeline_mode<synchronous>, transform_indices = @transform_2, window_bounds = array<i64: 3, 128, 128>}, {pipeline_mode = #tpu.pipeline_mode<synchronous>, transform_indices = @transform_3, window_bounds = array<i64: 128, 128>}, {pipeline_mode = #tpu.pipeline_mode<synchronous>, transform_indices = @transform_4, window_bounds = array<i64: 4, 1, 128>}, {pipeline_mode = #tpu.pipeline_mode<synchronous>, transform_indices = @transform_5, window_bounds = array<i64: 1, 128>}, {transform_indices = @transform_6, window_bounds = array<i64: 128, 128>}]} {
    %c0 = arith.constant 0 : index
    %c0_0 = arith.constant 0 : index
    %0 = vector.load %arg1[%c0, %c0_0] : memref<128x128xbf16, #tpu.memory_space<vmem>>, vector<128x128xbf16>
    %c0_1 = arith.constant 0 : index
    %c0_2 = arith.constant 0 : index
    %1 = vector.load %arg2[%c0_1, %c0_2] : memref<128x128xbf16, #tpu.memory_space<vmem>>, vector<128x128xbf16>
    %cst = arith.constant dense<0.000000e+00> : vector<128x128xf32>
    %2 = tpu.matmul %0, %1, %cst {dimension_numbers = #tpu.dot_dimension_numbers<[1], [0], [0], [1], [0, 0, 1, 1], [], []>} : vector<128x128xbf16>, vector<128x128xbf16>, vector<128x128xf32> -> vector<128x128xf32>
    %c0_3 = arith.constant 0 : index
    %c0_4 = arith.constant 0 : index
    %c0_5 = arith.constant 0 : index
    %3 = vector.load %arg5[%c0_3, %c0_4, %c0_5] : memref<4x1x128xf32, #tpu.memory_space<vmem>>, vector<1x1x128xf32>
    %4 = vector.shape_cast %3 : vector<1x1x128xf32> to vector<1x128xf32>
    %5 = vector.broadcast %4 : vector<1x128xf32> to vector<128x128xf32>
    %6 = arith.addf %2, %5 : vector<128x128xf32>
    %cst_6 = arith.constant 0.000000e+00 : f32
    %7 = vector.broadcast %cst_6 : f32 to vector<128x128xf32>
    %8 = arith.maximumf %6, %7 : vector<128x128xf32>
    %9 = arith.truncf %8 : vector<128x128xf32> to vector<128x128xbf16>
    %c0_7 = arith.constant 0 : index
    %c0_8 = arith.constant 0 : index
    %c0_9 = arith.constant 0 : index
    %10 = vector.load %arg3[%c0_7, %c0_8, %c0_9] : memref<3x128x128xbf16, #tpu.memory_space<vmem>>, vector<1x128x128xbf16>
    %11 = vector.shape_cast %10 : vector<1x128x128xbf16> to vector<128x128xbf16>
    %cst_10 = arith.constant dense<0.000000e+00> : vector<128x128xf32>
    %12 = tpu.matmul %9, %11, %cst_10 {dimension_numbers = #tpu.dot_dimension_numbers<[1], [0], [0], [1], [0, 0, 1, 1], [], []>} : vector<128x128xbf16>, vector<128x128xbf16>, vector<128x128xf32> -> vector<128x128xf32>
    %c1 = arith.constant 1 : index
    %c0_11 = arith.constant 0 : index
    %c0_12 = arith.constant 0 : index
    %13 = vector.load %arg5[%c1, %c0_11, %c0_12] : memref<4x1x128xf32, #tpu.memory_space<vmem>>, vector<1x1x128xf32>
    %14 = vector.shape_cast %13 : vector<1x1x128xf32> to vector<1x128xf32>
    %15 = vector.broadcast %14 : vector<1x128xf32> to vector<128x128xf32>
    %16 = arith.addf %12, %15 : vector<128x128xf32>
    %cst_13 = arith.constant 0.000000e+00 : f32
    %17 = vector.broadcast %cst_13 : f32 to vector<128x128xf32>
    %18 = arith.maximumf %16, %17 : vector<128x128xf32>
    %19 = arith.truncf %18 : vector<128x128xf32> to vector<128x128xbf16>
    %c1_14 = arith.constant 1 : index
    %c0_15 = arith.constant 0 : index
    %c0_16 = arith.constant 0 : index
    %20 = vector.load %arg3[%c1_14, %c0_15, %c0_16] : memref<3x128x128xbf16, #tpu.memory_space<vmem>>, vector<1x128x128xbf16>
    %21 = vector.shape_cast %20 : vector<1x128x128xbf16> to vector<128x128xbf16>
    %cst_17 = arith.constant dense<0.000000e+00> : vector<128x128xf32>
    %22 = tpu.matmul %19, %21, %cst_17 {dimension_numbers = #tpu.dot_dimension_numbers<[1], [0], [0], [1], [0, 0, 1, 1], [], []>} : vector<128x128xbf16>, vector<128x128xbf16>, vector<128x128xf32> -> vector<128x128xf32>
    %c2 = arith.constant 2 : index
    %c0_18 = arith.constant 0 : index
    %c0_19 = arith.constant 0 : index
    %23 = vector.load %arg5[%c2, %c0_18, %c0_19] : memref<4x1x128xf32, #tpu.memory_space<vmem>>, vector<1x1x128xf32>
    %24 = vector.shape_cast %23 : vector<1x1x128xf32> to vector<1x128xf32>
    %25 = vector.broadcast %24 : vector<1x128xf32> to vector<128x128xf32>
    %26 = arith.addf %22, %25 : vector<128x128xf32>
    %cst_20 = arith.constant 0.000000e+00 : f32
    %27 = vector.broadcast %cst_20 : f32 to vector<128x128xf32>
    %28 = arith.maximumf %26, %27 : vector<128x128xf32>
    %29 = arith.truncf %28 : vector<128x128xf32> to vector<128x128xbf16>
    %c2_21 = arith.constant 2 : index
    %c0_22 = arith.constant 0 : index
    %c0_23 = arith.constant 0 : index
    %30 = vector.load %arg3[%c2_21, %c0_22, %c0_23] : memref<3x128x128xbf16, #tpu.memory_space<vmem>>, vector<1x128x128xbf16>
    %31 = vector.shape_cast %30 : vector<1x128x128xbf16> to vector<128x128xbf16>
    %cst_24 = arith.constant dense<0.000000e+00> : vector<128x128xf32>
    %32 = tpu.matmul %29, %31, %cst_24 {dimension_numbers = #tpu.dot_dimension_numbers<[1], [0], [0], [1], [0, 0, 1, 1], [], []>} : vector<128x128xbf16>, vector<128x128xbf16>, vector<128x128xf32> -> vector<128x128xf32>
    %c3 = arith.constant 3 : index
    %c0_25 = arith.constant 0 : index
    %c0_26 = arith.constant 0 : index
    %33 = vector.load %arg5[%c3, %c0_25, %c0_26] : memref<4x1x128xf32, #tpu.memory_space<vmem>>, vector<1x1x128xf32>
    %34 = vector.shape_cast %33 : vector<1x1x128xf32> to vector<1x128xf32>
    %35 = vector.broadcast %34 : vector<1x128xf32> to vector<128x128xf32>
    %36 = arith.addf %32, %35 : vector<128x128xf32>
    %cst_27 = arith.constant 0.000000e+00 : f32
    %37 = vector.broadcast %cst_27 : f32 to vector<128x128xf32>
    %38 = arith.maximumf %36, %37 : vector<128x128xf32>
    %39 = arith.truncf %38 : vector<128x128xf32> to vector<128x128xbf16>
    %c0_28 = arith.constant 0 : index
    %c0_29 = arith.constant 0 : index
    %40 = vector.load %arg4[%c0_28, %c0_29] : memref<128x128xbf16, #tpu.memory_space<vmem>>, vector<128x128xbf16>
    %cst_30 = arith.constant dense<0.000000e+00> : vector<128x128xf32>
    %41 = tpu.matmul %39, %40, %cst_30 {dimension_numbers = #tpu.dot_dimension_numbers<[1], [0], [0], [1], [0, 0, 1, 1], [], []>} : vector<128x128xbf16>, vector<128x128xbf16>, vector<128x128xf32> -> vector<128x128xf32>
    %c0_31 = arith.constant 0 : index
    %c0_32 = arith.constant 0 : index
    %42 = vector.load %arg6[%c0_31, %c0_32] : memref<1x128xf32, #tpu.memory_space<vmem>>, vector<1x128xf32>
    %43 = vector.broadcast %42 : vector<1x128xf32> to vector<128x128xf32>
    %44 = arith.addf %41, %43 : vector<128x128xf32>
    %c0_33 = arith.constant 0 : index
    %c0_34 = arith.constant 0 : index
    %45 = vector.load %arg7[%c0_33, %c0_34] : memref<128x128xf32, #tpu.memory_space<vmem>>, vector<128x128xf32>
    tpu.vector_store %arg7[%c0_33, %c0_34], %44 {strides = array<i32>} : memref<128x128xf32, #tpu.memory_space<vmem>>, vector<128x128xf32>,
    return
  }
  func.func @transform_0(%arg0: i32) -> (i32, i32) {
    %c0_i32 = arith.constant 0 : i32
    %c0_i32_0 = arith.constant 0 : i32
    return %arg0, %c0_i32 : i32, i32
  }
  func.func @transform_1(%arg0: i32) -> (i32, i32) {
    %c0_i32 = arith.constant 0 : i32
    %c0_i32_0 = arith.constant 0 : i32
    %c0_i32_1 = arith.constant 0 : i32
    return %c0_i32, %c0_i32_0 : i32, i32
  }
  func.func @transform_2(%arg0: i32) -> (i32, i32, i32) {
    %c0_i32 = arith.constant 0 : i32
    %c0_i32_0 = arith.constant 0 : i32
    %c0_i32_1 = arith.constant 0 : i32
    %c0_i32_2 = arith.constant 0 : i32
    return %c0_i32, %c0_i32_0, %c0_i32_1 : i32, i32, i32
  }
  func.func @transform_3(%arg0: i32) -> (i32, i32) {
    %c0_i32 = arith.constant 0 : i32
    %c0_i32_0 = arith.constant 0 : i32
    %c0_i32_1 = arith.constant 0 : i32
    return %c0_i32, %c0_i32_0 : i32, i32
  }
  func.func @transform_4(%arg0: i32) -> (i32, i32, i32) {
    %c0_i32 = arith.constant 0 : i32
    %c0_i32_0 = arith.constant 0 : i32
    %c0_i32_1 = arith.constant 0 : i32
    %c0_i32_2 = arith.constant 0 : i32
    return %c0_i32, %c0_i32_0, %c0_i32_1 : i32, i32, i32
  }
  func.func @transform_5(%arg0: i32) -> (i32, i32) {
    %c0_i32 = arith.constant 0 : i32
    %c0_i32_0 = arith.constant 0 : i32
    %c0_i32_1 = arith.constant 0 : i32
    return %c0_i32, %c0_i32_0 : i32, i32
  }
  func.func @transform_6(%arg0: i32) -> (i32, i32) {
    %c0_i32 = arith.constant 0 : i32
    %c0_i32_0 = arith.constant 0 : i32
    return %arg0, %c0_i32 : i32, i32
  }
}

</mosaic_0001>

<llo_original>
// kernel: tpu_custom_call.1
$region0: #{tpu_custom_call.1}
  #allocation0 [shape = 'u32[]', space=smem, size = 0x4, offset = 0x4, fixed_abs, tag = 'smem constant byte address 0x4 - core index']
  #allocation1 [shape = 'u32[144,128]{1,0:T(1,128)}', space=vmem, size = 0x12000, scoped, tag = 'internal scratch']
  %s0 = inlined_call_operand.hbm [shape: bf16[128,128], index: 0, kind: input, shape index: {}]
  %s1 = inlined_call_operand.hbm [shape: bf16[128,128], index: 1, kind: input, shape index: {}]
  %s2 = inlined_call_operand.hbm [shape: bf16[3,128,128], index: 2, kind: input, shape index: {}]
  %s3 = inlined_call_operand.hbm [shape: bf16[128,128], index: 3, kind: input, shape index: {}]
  %s4 = inlined_call_operand.vmem [shape: f32[4,1,128], index: 4, kind: input, shape index: {}]
  %s5 = inlined_call_operand.vmem [shape: f32[1,128], index: 5, kind: input, shape index: {}]
  %s6 = inlined_call_operand.hbm [shape: f32[128,128], index: 6, kind: output, shape index: {}]
  %s7 = sld [smem:[#allocation0]]
  $region50: #{tpu_custom_call.1} parent=0
    _
  %s9 = ssub.s32 1, %s7
  %s10 = scalar_select 0, %s9, %s7
  $region1: #{tpu_custom_call.1} parent=0
    #allocation2 [shape = 'u8[32768]{0}', space=vmem, size = 0x8000, scoped, tag = 'input window, operand 0, single buffered']
    #allocation3 [shape = 's32[1]{0}', space=sflag, size = 0x4, scoped, tag = 'scoped memory for tpu_custom_call.1']
    #allocation4 [shape = 's32[1]{0}', space=sflag, size = 0x4, scoped, tag = 'scoped memory for tpu_custom_call.1']
    #allocation5 [shape = 'u8[32768]{0}', space=vmem, size = 0x8000, scoped, tag = 'input window, operand 1, single buffered']
    #allocation6 [shape = 's32[1]{0}', space=sflag, size = 0x4, scoped, tag = 'scoped memory for tpu_custom_call.1']
    #allocation7 [shape = 'u8[98304]{0}', space=vmem, size = 0x18000, scoped, tag = 'input window, operand 2, single buffered']
    #allocation8 [shape = 'u8[32768]{0}', space=vmem, size = 0x8000, scoped, tag = 'input window, operand 3, single buffered']
    #allocation9 [shape = 's32[1]{0}', space=sflag, size = 0x4, scoped, tag = 'scoped memory for tpu_custom_call.1']
    #allocation10 [shape = 'u8[65536]{0}', space=vmem, size = 0x10000, scoped, tag = 'output window, operand 0, single buffered']
    %11 = vsyncpa [#allocation3], 0
    %12 = vsyncpa [#allocation6], 0
    %13 = vsyncpa [#allocation9], 0
    %14 = vsyncpa [#allocation4], 0
    // Predicated region
    $region2: #{tpu_custom_call.1} parent=1 // pred_check
      _
    $region3: #{tpu_custom_call.1} parent=1 // pred_check_branch
      %16 = sbr.rel (0) target = $region5
    $region4: #{tpu_custom_call.1} parent=1 // pred_region
      %s18 = ssub.s32 1024, 1024
      %19 = vsyncadd [#allocation3], %s18
      %s20 = sshll.u32 [#allocation2], 4
      %s21 = int_to_ptr.vmem [resolvable:$true] %s20
      %26 = dma.hbm_to_vmem [thread:$0]  %s0, 1024, %s21, [#allocation3], 64, 64, 4
    $region5: #{tpu_custom_call.1} parent=1 // pred_fallthru
      _
    // Predicated region
    $region6: #{tpu_custom_call.1} parent=1 // pred_check
      _
    $region7: #{tpu_custom_call.1} parent=1 // pred_check_branch
      %28 = sbr.rel (0) target = $region9
    $region8: #{tpu_custom_call.1} parent=1 // pred_region
      %s30 = ssub.s32 1024, 1024
      %31 = vsyncadd [#allocation6], %s30
      %s32 = sshll.u32 [#allocation5], 4
      %s33 = int_to_ptr.vmem [resolvable:$true] %s32
      %38 = dma.hbm_to_vmem [thread:$0]  %s1, 1024, %s33, [#allocation6], 64, 64, 4
    $region9: #{tpu_custom_call.1} parent=1 // pred_fallthru
      _
    // Predicated region
    $region10: #{tpu_custom_call.1} parent=1 // pred_check
      _
    $region11: #{tpu_custom_call.1} parent=1 // pred_check_branch
      %40 = sbr.rel (0) target = $region13
    $region12: #{tpu_custom_call.1} parent=1 // pred_region
      %s42 = ssub.s32 3072, 3072
      %43 = vsyncadd [#allocation6], %s42
      %s44 = sshll.u32 [#allocation7], 4
      %s45 = int_to_ptr.vmem [resolvable:$true] %s44
      %50 = dma.hbm_to_vmem [thread:$0]  %s2, 3072, %s45, [#allocation6], 64, 64, 4
    $region13: #{tpu_custom_call.1} parent=1 // pred_fallthru
      _
    // Predicated region
    $region14: #{tpu_custom_call.1} parent=1 // pred_check
      _
    $region15: #{tpu_custom_call.1} parent=1 // pred_check_branch
      %52 = sbr.rel (0) target = $region17
    $region16: #{tpu_custom_call.1} parent=1 // pred_region
      %s54 = ssub.s32 1024, 1024
      %55 = vsyncadd [#allocation9], %s54
      %s56 = sshll.u32 [#allocation8], 4
      %s57 = int_to_ptr.vmem [resolvable:$true] %s56
      %62 = dma.hbm_to_vmem [thread:$0]  %s3, 1024, %s57, [#allocation9], 64, 64, 4
    $region17: #{tpu_custom_call.1} parent=1 // pred_fallthru
      _
    // Predicated region
    $region18: #{tpu_custom_call.1} parent=1 // pred_check
      _
    $region19: #{tpu_custom_call.1} parent=1 // pred_check_branch
      %64 = sbr.rel (0) target = $region21
    $region20: #{tpu_custom_call.1} parent=1 // pred_region
      _
    $region21: #{tpu_custom_call.1} parent=1 // pred_fallthru
      _
    // Predicated region
    $region22: #{tpu_custom_call.1} parent=1 // pred_check
      _
    $region23: #{tpu_custom_call.1} parent=1 // pred_check_branch
      %66 = sbr.rel (0) target = $region25
    $region24: #{tpu_custom_call.1} parent=1 // pred_region
      _
    $region25: #{tpu_custom_call.1} parent=1 // pred_fallthru
      _
    // Predicated region
    $region26: #{tpu_custom_call.1} parent=1 // pred_check
      _
    $region27: #{tpu_custom_call.1} parent=1 // pred_check_branch
      %68 = sbr.rel (0) target = $region29
    $region28: #{tpu_custom_call.1} parent=1 // pred_region
      %69 = dma.done [#allocation3], 1024
    $region29: #{tpu_custom_call.1} parent=1 // pred_fallthru
      _
    // Predicated region
    $region30: #{tpu_custom_call.1} parent=1 // pred_check
      _
    $region31: #{tpu_custom_call.1} parent=1 // pred_check_branch
      %71 = sbr.rel (0) target = $region33
    $region32: #{tpu_custom_call.1} parent=1 // pred_region
      %72 = dma.done [#allocation6], 1024
    $region33: #{tpu_custom_call.1} parent=1 // pred_fallthru
      _
    // Predicated region
    $region34: #{tpu_custom_call.1} parent=1 // pred_check
      _
    $region35: #{tpu_custom_call.1} parent=1 // pred_check_branch
      %74 = sbr.rel (0) target = $region37
    $region36: #{tpu_custom_call.1} parent=1 // pred_region
      %75 = dma.done [#allocation6], 3072
    $region37: #{tpu_custom_call.1} parent=1 // pred_fallthru
      _
    // Predicated region
    $region38: #{tpu_custom_call.1} parent=1 // pred_check
      _
    $region39: #{tpu_custom_call.1} parent=1 // pred_check_branch
      %77 = sbr.rel (0) target = $region41
    $region40: #{tpu_custom_call.1} parent=1 // pred_region
      %78 = dma.done [#allocation9], 1024
    $region41: #{tpu_custom_call.1} parent=1 // pred_fallthru
      _
    %v80 = vld [vmem:[#allocation2] sm:$0xf]
    %v81 = vld [vmem:[#allocation2 + $0x4] sm:$0xf]
    %v82 = vld [vmem:[#allocation2 + $0x8] sm:$0xf]
    %v83 = vld [vmem:[#allocation2 + $0xc] sm:$0xf]
    %v84 = vld [vmem:[#allocation2 + $0x10] sm:$0xf]
    %v85 = vld [vmem:[#allocation2 + $0x14] sm:$0xf]
    %v86 = vld [vmem:[#allocation2 + $0x18] sm:$0xf]
    %v87 = vld [vmem:[#allocation2 + $0x1c] sm:$0xf]
    %v88 = vld [vmem:[#allocation2 + $0x20] sm:$0xf]
    %v89 = vld [vmem:[#allocation2 + $0x24] sm:$0xf]
    %v90 = vld [vmem:[#allocation2 + $0x28] sm:$0xf]
    %v91 = vld [vmem:[#allocation2 + $0x2c] sm:$0xf]
    %v92 = vld [vmem:[#allocation2 + $0x30] sm:$0xf]
    %v93 = vld [vmem:[#allocation2 + $0x34] sm:$0xf]
    %v94 = vld [vmem:[#allocation2 + $0x38] sm:$0xf]
    %v95 = vld [vmem:[#allocation2 + $0x3c] sm:$0xf]
    %v96 = vld [vmem:[#allocation5] sm:$0xf]
    %v97 = vld [vmem:[#allocation5 + $0x4] sm:$0xf]
    %v98 = vld [vmem:[#allocation5 + $0x8] sm:$0xf]
    %v99 = vld [vmem:[#allocation5 + $0xc] sm:$0xf]
    %v100 = vld [vmem:[#allocation5 + $0x10] sm:$0xf]
    %v101 = vld [vmem:[#allocation5 + $0x14] sm:$0xf]
    %v102 = vld [vmem:[#allocation5 + $0x18] sm:$0xf]
    %v103 = vld [vmem:[#allocation5 + $0x1c] sm:$0xf]
    %v104 = vld [vmem:[#allocation5 + $0x20] sm:$0xf]
    %v105 = vld [vmem:[#allocation5 + $0x24] sm:$0xf]
    %v106 = vld [vmem:[#allocation5 + $0x28] sm:$0xf]
    %v107 = vld [vmem:[#allocation5 + $0x2c] sm:$0xf]
    %v108 = vld [vmem:[#allocation5 + $0x30] sm:$0xf]
    %v109 = vld [vmem:[#allocation5 + $0x34] sm:$0xf]
    %v110 = vld [vmem:[#allocation5 + $0x38] sm:$0xf]
    %v111 = vld [vmem:[#allocation5 + $0x3c] sm:$0xf]
    %v112 = vld [vmem:[%s4] sm:$0x1]
    %v114 = vlaneseq
    %v115 = vshrl.u32 %v114, 7
    %v116 = vsub.s32 0, %v115
    %v117 = vrot.slane %v112, %v116
    %v135 = vunpack.c.l.b16 %v80
    %v136 = vunpack.c.l.b16 %v81
    %v137 = vunpack.c.l.b16 %v82
    %v138 = vunpack.c.l.b16 %v83
    %v139 = vunpack.c.l.b16 %v84
    %v140 = vunpack.c.l.b16 %v85
    %v141 = vunpack.c.l.b16 %v86
    %v142 = vunpack.c.l.b16 %v87
    %v143 = vunpack.c.l.b16 %v88
    %v144 = vunpack.c.l.b16 %v89
    %v145 = vunpack.c.l.b16 %v90
    %v146 = vunpack.c.l.b16 %v91
    %v147 = vunpack.c.l.b16 %v92
    %v148 = vunpack.c.l.b16 %v93
    %v149 = vunpack.c.l.b16 %v94
    %v150 = vunpack.c.l.b16 %v95
    %v151 = vpack.c.b16 %v136, %v135
    %v152 = vpack.c.b16 %v138, %v137
    %v153 = vpack.c.b16 %v140, %v139
    %v154 = vpack.c.b16 %v142, %v141
    %v155 = vpack.c.b16 %v144, %v143
    %v156 = vpack.c.b16 %v146, %v145
    %v157 = vpack.c.b16 %v148, %v147
    %v158 = vpack.c.b16 %v150, %v149
    %v183 = vunpack.c.l.b16 %v96
    %v184 = vunpack.c.l.b16 %v97
    %v185 = vunpack.c.l.b16 %v98
    %v186 = vunpack.c.l.b16 %v99
    %v187 = vunpack.c.l.b16 %v100
    %v188 = vunpack.c.l.b16 %v101
    %v189 = vunpack.c.l.b16 %v102
    %v190 = vunpack.c.l.b16 %v103
    %v191 = vunpack.c.l.b16 %v104
    %v192 = vunpack.c.l.b16 %v105
    %v193 = vunpack.c.l.b16 %v106
    %v194 = vunpack.c.l.b16 %v107
    %v195 = vunpack.c.l.b16 %v108
    %v196 = vunpack.c.l.b16 %v109
    %v197 = vunpack.c.l.b16 %v110
    %v198 = vunpack.c.l.b16 %v111
    %v199 = vpack.c.b16 %v184, %v183
    %v200 = vpack.c.b16 %v186, %v185
    %v201 = vpack.c.b16 %v188, %v187
    %v202 = vpack.c.b16 %v190, %v189
    %v203 = vpack.c.b16 %v192, %v191
    %v204 = vpack.c.b16 %v194, %v193
    %v205 = vpack.c.b16 %v196, %v195
    %v206 = vpack.c.b16 %v198, %v197
    %215 = vmatprep.subr.bf16.mxu0 0
    %216 = vmatpush1.bf16.msra.mxu0 %v199
    %217 = vmatprep.subr.bf16.mxu0 0
    %218 = vmatpush1.bf16.msra.mxu0 %v200
    %219 = vmatprep.subr.bf16.mxu0 0
    %220 = vmatpush1.bf16.msra.mxu0 %v201
    %221 = vmatprep.subr.bf16.mxu0 0
    %222 = vmatpush1.bf16.msra.mxu0 %v202
    %223 = vmatprep.subr.bf16.mxu0 0
    %224 = vmatpush1.bf16.msra.mxu0 %v203
    %225 = vmatprep.subr.bf16.mxu0 0
    %226 = vmatpush1.bf16.msra.mxu0 %v204
    %227 = vmatprep.subr.bf16.mxu0 0
    %228 = vmatpush1.bf16.msra.mxu0 %v205
    %229 = vmatprep.subr.bf16.mxu0 0
    %230 = vmatpush1.bf16.msra.mxu0 %v206
    %231 = vmatprep.subr.bf16.mxu0 0
    %232 = vmatpush1.bf16.msra.mxu0 0
    %233 = vmatprep.subr.bf16.mxu0 0
    %234 = vmatpush1.bf16.msra.mxu0 0
    %235 = vmatprep.subr.bf16.mxu0 0
    %236 = vmatpush1.bf16.msra.mxu0 0
    %237 = vmatprep.subr.bf16.mxu0 0
    %238 = vmatpush1.bf16.msra.mxu0 0
    %239 = vmatprep.subr.bf16.mxu0 0
    %240 = vmatpush1.bf16.msra.mxu0 0
    %241 = vmatprep.subr.bf16.mxu0 0
    %242 = vmatpush1.bf16.msra.mxu0 0
    %243 = vmatprep.subr.bf16.mxu0 0
    %244 = vmatpush1.bf16.msra.mxu0 0
    %245 = vmatprep.subr.bf16.mxu0 0
    %246 = vmatpush1.bf16.msra.mxu0 0
    %247 = vmatprep.mubr.bf16.mxu0 0
    %248 = vmatmul.mubr.bf16.gmra.mrb[0].mxu0 %v151
    %v249 = vpop.f32.mrb[0].mxu0
    %v250 = vadd.f32 %v117, %v249
    %v251 = vpop.f32.mrb[0].mxu0
    %v252 = vpop.f32.mrb[0].mxu0
    %v253 = vadd.f32 %v117, %v252
    %v254 = vpop.f32.mrb[0].mxu0
    %255 = vmatprep.mubr.bf16.mxu0 0
    %256 = vmatmul.mubr.bf16.gmra.mrb[0].mxu0 %v152
    %v257 = vpop.f32.mrb[0].mxu0
    %v258 = vadd.f32 %v117, %v257
    %v259 = vpop.f32.mrb[0].mxu0
    %v260 = vpop.f32.mrb[0].mxu0
    %v261 = vadd.f32 %v117, %v260
    %v262 = vpop.f32.mrb[0].mxu0
    %263 = vmatprep.mubr.bf16.mxu0 0
    %264 = vmatmul.mubr.bf16.gmra.mrb[0].mxu0 %v153
    %v265 = vpop.f32.mrb[0].mxu0
    %v266 = vadd.f32 %v117, %v265
    %v267 = vpop.f32.mrb[0].mxu0
    %v268 = vpop.f32.mrb[0].mxu0
    %v269 = vadd.f32 %v117, %v268
    %v270 = vpop.f32.mrb[0].mxu0
    %271 = vmatprep.mubr.bf16.mxu0 0
    %272 = vmatmul.mubr.bf16.gmra.mrb[0].mxu0 %v154
    %v273 = vpop.f32.mrb[0].mxu0
    %v274 = vadd.f32 %v117, %v273
    %v275 = vpop.f32.mrb[0].mxu0
    %v276 = vpop.f32.mrb[0].mxu0
    %v277 = vadd.f32 %v117, %v276
    %v278 = vpop.f32.mrb[0].mxu0
    %279 = vmatprep.mubr.bf16.mxu0 0
    %280 = vmatmul.mubr.bf16.gmra.mrb[0].mxu0 %v155
    %v281 = vpop.f32.mrb[0].mxu0
    %v282 = vadd.f32 %v117, %v281
    %v283 = vpop.f32.mrb[0].mxu0
    %v284 = vpop.f32.mrb[0].mxu0
    %v285 = vadd.f32 %v117, %v284
    %v286 = vpop.f32.mrb[0].mxu0
    %287 = vmatprep.mubr.bf16.mxu0 0
    %288 = vmatmul.mubr.bf16.gmra.mrb[0].mxu0 %v156
    %v289 = vpop.f32.mrb[0].mxu0
    %v290 = vadd.f32 %v117, %v289
    %v291 = vpop.f32.mrb[0].mxu0
    %v292 = vpop.f32.mrb[0].mxu0
    %v293 = vadd.f32 %v117, %v292
    %v294 = vpop.f32.mrb[0].mxu0
    %295 = vmatprep.mubr.bf16.mxu0 0
    %296 = vmatmul.mubr.bf16.gmra.mrb[0].mxu0 %v157
    %v297 = vpop.f32.mrb[0].mxu0
    %v298 = vadd.f32 %v117, %v297
    %v299 = vpop.f32.mrb[0].mxu0
    %v300 = vpop.f32.mrb[0].mxu0
    %v301 = vadd.f32 %v117, %v300
    %v302 = vpop.f32.mrb[0].mxu0
    %303 = vmatprep.mubr.bf16.mxu0 0
    %304 = vmatmul.mubr.bf16.gmra.mrb[0].mxu0 %v158
    %v305 = vpop.f32.mrb[0].mxu0
    %v306 = vadd.f32 %v117, %v305
    %v307 = vpop.f32.mrb[0].mxu0
    %v308 = vpop.f32.mrb[0].mxu0
    %v309 = vadd.f32 %v117, %v308
    %v310 = vpop.f32.mrb[0].mxu0
    %311 = vdwg.mxu0
    %v312 = vmax.f32 %v250, 0.0
    %v313 = vmax.f32 %v253, 0.0
    %v314 = vmax.f32 %v258, 0.0
    %v315 = vmax.f32 %v261, 0.0
    %v316 = vmax.f32 %v266, 0.0
    %v317 = vmax.f32 %v269, 0.0
    %v318 = vmax.f32 %v274, 0.0
    %v319 = vmax.f32 %v277, 0.0
    %v320 = vmax.f32 %v282, 0.0
    %v321 = vmax.f32 %v285, 0.0
    %v322 = vmax.f32 %v290, 0.0
    %v323 = vmax.f32 %v293, 0.0
    %v324 = vmax.f32 %v298, 0.0
    %v325 = vmax.f32 %v301, 0.0
    %v326 = vmax.f32 %v306, 0.0
    %v327 = vmax.f32 %v309, 0.0
    %v328 = vpack.c.bf16 %v313, %v312
    %v329 = vpack.c.bf16 %v315, %v314
    %v330 = vpack.c.bf16 %v317, %v316
    %v331 = vpack.c.bf16 %v319, %v318
    %v332 = vpack.c.bf16 %v321, %v320
    %v333 = vpack.c.bf16 %v323, %v322
    %v334 = vpack.c.bf16 %v325, %v324
    %v335 = vpack.c.bf16 %v327, %v326
    %v336 = vld [vmem:[#allocation7] sm:$0xf]
    %v337 = vld [vmem:[#allocation7 + $0x4] sm:$0xf]
    %v338 = vld [vmem:[#allocation7 + $0x8] sm:$0xf]
    %v339 = vld [vmem:[#allocation7 + $0xc] sm:$0xf]
    %v340 = vld [vmem:[#allocation7 + $0x10] sm:$0xf]
    %v341 = vld [vmem:[#allocation7 + $0x14] sm:$0xf]
    %v342 = vld [vmem:[#allocation7 + $0x18] sm:$0xf]
    %v343 = vld [vmem:[#allocation7 + $0x1c] sm:$0xf]
    %v344 = vld [vmem:[#allocation7 + $0x20] sm:$0xf]
    %v345 = vld [vmem:[#allocation7 + $0x24] sm:$0xf]
    %v346 = vld [vmem:[#allocation7 + $0x28] sm:$0xf]
    %v347 = vld [vmem:[#allocation7 + $0x2c] sm:$0xf]
    %v348 = vld [vmem:[#allocation7 + $0x30] sm:$0xf]
    %v349 = vld [vmem:[#allocation7 + $0x34] sm:$0xf]
    %v350 = vld [vmem:[#allocation7 + $0x38] sm:$0xf]
    %v351 = vld [vmem:[#allocation7 + $0x3c] sm:$0xf]
    %s352 = scalar_lea.vmem %s4, 1
    %v353 = vld [vmem:[%s352] sm:$0x1]
    %v355 = vlaneseq
    %v356 = vshrl.u32 %v355, 7
    %v357 = vsub.s32 0, %v356
    %v358 = vrot.slane %v353, %v357
    %v376 = vunpack.c.l.b16 %v336
    %v377 = vunpack.c.l.b16 %v337
    %v378 = vunpack.c.l.b16 %v338
    %v379 = vunpack.c.l.b16 %v339
    %v380 = vunpack.c.l.b16 %v340
    %v381 = vunpack.c.l.b16 %v341
    %v382 = vunpack.c.l.b16 %v342
    %v383 = vunpack.c.l.b16 %v343
    %v384 = vunpack.c.l.b16 %v344
    %v385 = vunpack.c.l.b16 %v345
    %v386 = vunpack.c.l.b16 %v346
    %v387 = vunpack.c.l.b16 %v347
    %v388 = vunpack.c.l.b16 %v348
    %v389 = vunpack.c.l.b16 %v349
    %v390 = vunpack.c.l.b16 %v350
    %v391 = vunpack.c.l.b16 %v351
    %v392 = vpack.c.b16 %v377, %v376
    %v393 = vpack.c.b16 %v379, %v378
    %v394 = vpack.c.b16 %v381, %v380
    %v395 = vpack.c.b16 %v383, %v382
    %v396 = vpack.c.b16 %v385, %v384
    %v397 = vpack.c.b16 %v387, %v386
    %v398 = vpack.c.b16 %v389, %v388
    %v399 = vpack.c.b16 %v391, %v390
    %408 = vmatprep.subr.bf16.mxu0 0
    %409 = vmatpush1.bf16.msra.mxu0 %v392
    %410 = vmatprep.subr.bf16.mxu0 0
    %411 = vmatpush1.bf16.msra.mxu0 %v393
    %412 = vmatprep.subr.bf16.mxu0 0
    %413 = vmatpush1.bf16.msra.mxu0 %v394
    %414 = vmatprep.subr.bf16.mxu0 0
    %415 = vmatpush1.bf16.msra.mxu0 %v395
    %416 = vmatprep.subr.bf16.mxu0 0
    %417 = vmatpush1.bf16.msra.mxu0 %v396
    %418 = vmatprep.subr.bf16.mxu0 0
    %419 = vmatpush1.bf16.msra.mxu0 %v397
    %420 = vmatprep.subr.bf16.mxu0 0
    %421 = vmatpush1.bf16.msra.mxu0 %v398
    %422 = vmatprep.subr.bf16.mxu0 0
    %423 = vmatpush1.bf16.msra.mxu0 %v399
    %424 = vmatprep.subr.bf16.mxu0 0
    %425 = vmatpush1.bf16.msra.mxu0 0
    %426 = vmatprep.subr.bf16.mxu0 0
    %427 = vmatpush1.bf16.msra.mxu0 0
    %428 = vmatprep.subr.bf16.mxu0 0
    %429 = vmatpush1.bf16.msra.mxu0 0
    %430 = vmatprep.subr.bf16.mxu0 0
    %431 = vmatpush1.bf16.msra.mxu0 0
    %432 = vmatprep.subr.bf16.mxu0 0
    %433 = vmatpush1.bf16.msra.mxu0 0
    %434 = vmatprep.subr.bf16.mxu0 0
    %435 = vmatpush1.bf16.msra.mxu0 0
    %436 = vmatprep.subr.bf16.mxu0 0
    %437 = vmatpush1.bf16.msra.mxu0 0
    %438 = vmatprep.subr.bf16.mxu0 0
    %439 = vmatpush1.bf16.msra.mxu0 0
    %440 = vmatprep.mubr.bf16.mxu0 0
    %441 = vmatmul.mubr.bf16.gmra.mrb[0].mxu0 %v328
    %v442 = vpop.f32.mrb[0].mxu0
    %v443 = vadd.f32 %v358, %v442
    %v444 = vpop.f32.mrb[0].mxu0
    %v445 = vpop.f32.mrb[0].mxu0
    %v446 = vadd.f32 %v358, %v445
    %v447 = vpop.f32.mrb[0].mxu0
    %448 = vmatprep.mubr.bf16.mxu0 0
    %449 = vmatmul.mubr.bf16.gmra.mrb[0].mxu0 %v329
    %v450 = vpop.f32.mrb[0].mxu0
    %v451 = vadd.f32 %v358, %v450
    %v452 = vpop.f32.mrb[0].mxu0
    %v453 = vpop.f32.mrb[0].mxu0
    %v454 = vadd.f32 %v358, %v453
    %v455 = vpop.f32.mrb[0].mxu0
    %456 = vmatprep.mubr.bf16.mxu0 0
    %457 = vmatmul.mubr.bf16.gmra.mrb[0].mxu0 %v330
    %v458 = vpop.f32.mrb[0].mxu0
    %v459 = vadd.f32 %v358, %v458
    %v460 = vpop.f32.mrb[0].mxu0
    %v461 = vpop.f32.mrb[0].mxu0
    %v462 = vadd.f32 %v358, %v461
    %v463 = vpop.f32.mrb[0].mxu0
    %464 = vmatprep.mubr.bf16.mxu0 0
    %465 = vmatmul.mubr.bf16.gmra.mrb[0].mxu0 %v331
    %v466 = vpop.f32.mrb[0].mxu0
    %v467 = vadd.f32 %v358, %v466
    %v468 = vpop.f32.mrb[0].mxu0
    %v469 = vpop.f32.mrb[0].mxu0
    %v470 = vadd.f32 %v358, %v469
    %v471 = vpop.f32.mrb[0].mxu0
    %472 = vmatprep.mubr.bf16.mxu0 0
    %473 = vmatmul.mubr.bf16.gmra.mrb[0].mxu0 %v332
    %v474 = vpop.f32.mrb[0].mxu0
    %v475 = vadd.f32 %v358, %v474
    %v476 = vpop.f32.mrb[0].mxu0
    %v477 = vpop.f32.mrb[0].mxu0
    %v478 = vadd.f32 %v358, %v477
    %v479 = vpop.f32.mrb[0].mxu0
    %480 = vmatprep.mubr.bf16.mxu0 0
    %481 = vmatmul.mubr.bf16.gmra.mrb[0].mxu0 %v333
    %v482 = vpop.f32.mrb[0].mxu0
    %v483 = vadd.f32 %v358, %v482
    %v484 = vpop.f32.mrb[0].mxu0
    %v485 = vpop.f32.mrb[0].mxu0
    %v486 = vadd.f32 %v358, %v485
    %v487 = vpop.f32.mrb[0].mxu0
    %488 = vmatprep.mubr.bf16.mxu0 0
    %489 = vmatmul.mubr.bf16.gmra.mrb[0].mxu0 %v334
    %v490 = vpop.f32.mrb[0].mxu0
    %v491 = vadd.f32 %v358, %v490
    %v492 = vpop.f32.mrb[0].mxu0
    %v493 = vpop.f32.mrb[0].mxu0
    %v494 = vadd.f32 %v358, %v493
    %v495 = vpop.f32.mrb[0].mxu0
    %496 = vmatprep.mubr.bf16.mxu0 0
    %497 = vmatmul.mubr.bf16.gmra.mrb[0].mxu0 %v335
    %v498 = vpop.f32.mrb[0].mxu0
    %v499 = vadd.f32 %v358, %v498
    %v500 = vpop.f32.mrb[0].mxu0
    %v501 = vpop.f32.mrb[0].mxu0
    %v502 = vadd.f32 %v358, %v501
    %v503 = vpop.f32.mrb[0].mxu0
    %504 = vdwg.mxu0
    %v505 = vmax.f32 %v443, 0.0
    %v506 = vmax.f32 %v446, 0.0
    %v507 = vmax.f32 %v451, 0.0
    %v508 = vmax.f32 %v454, 0.0
    %v509 = vmax.f32 %v459, 0.0
    %v510 = vmax.f32 %v462, 0.0
    %v511 = vmax.f32 %v467, 0.0
    %v512 = vmax.f32 %v470, 0.0
    %v513 = vmax.f32 %v475, 0.0
    %v514 = vmax.f32 %v478, 0.0
    %v515 = vmax.f32 %v483, 0.0
    %v516 = vmax.f32 %v486, 0.0
    %v517 = vmax.f32 %v491, 0.0
    %v518 = vmax.f32 %v494, 0.0
    %v519 = vmax.f32 %v499, 0.0
    %v520 = vmax.f32 %v502, 0.0
    %v521 = vpack.c.bf16 %v506, %v505
    %v522 = vpack.c.bf16 %v508, %v507
    %v523 = vpack.c.bf16 %v510, %v509
    %v524 = vpack.c.bf16 %v512, %v511
    %v525 = vpack.c.bf16 %v514, %v513
    %v526 = vpack.c.bf16 %v516, %v515
    %v527 = vpack.c.bf16 %v518, %v517
    %v528 = vpack.c.bf16 %v520, %v519
    %s529 = scalar_lea.vmem [#allocation7], 64
    %v530 = vld [vmem:[%s529] sm:$0xf]
    %v531 = vld [vmem:[%s529 + $0x4] sm:$0xf]
    %v532 = vld [vmem:[%s529 + $0x8] sm:$0xf]
    %v533 = vld [vmem:[%s529 + $0xc] sm:$0xf]
    %v534 = vld [vmem:[%s529 + $0x10] sm:$0xf]
    %v535 = vld [vmem:[%s529 + $0x14] sm:$0xf]
    %v536 = vld [vmem:[%s529 + $0x18] sm:$0xf]
    %v537 = vld [vmem:[%s529 + $0x1c] sm:$0xf]
    %v538 = vld [vmem:[%s529 + $0x20] sm:$0xf]
    %v539 = vld [vmem:[%s529 + $0x24] sm:$0xf]
    %v540 = vld [vmem:[%s529 + $0x28] sm:$0xf]
    %v541 = vld [vmem:[%s529 + $0x2c] sm:$0xf]
    %v542 = vld [vmem:[%s529 + $0x30] sm:$0xf]
    %v543 = vld [vmem:[%s529 + $0x34] sm:$0xf]
    %v544 = vld [vmem:[%s529 + $0x38] sm:$0xf]
    %v545 = vld [vmem:[%s529 + $0x3c] sm:$0xf]
    %s546 = scalar_lea.vmem %s4, 2
    %v547 = vld [vmem:[%s546] sm:$0x1]
    %v549 = vlaneseq
    %v550 = vshrl.u32 %v549, 7
    %v551 = vsub.s32 0, %v550
    %v552 = vrot.slane %v547, %v551
    %v570 = vunpack.c.l.b16 %v530
    %v571 = vunpack.c.l.b16 %v531
    %v572 = vunpack.c.l.b16 %v532
    %v573 = vunpack.c.l.b16 %v533
    %v574 = vunpack.c.l.b16 %v534
    %v575 = vunpack.c.l.b16 %v535
    %v576 = vunpack.c.l.b16 %v536
    %v577 = vunpack.c.l.b16 %v537
    %v578 = vunpack.c.l.b16 %v538
    %v579 = vunpack.c.l.b16 %v539
    %v580 = vunpack.c.l.b16 %v540
    %v581 = vunpack.c.l.b16 %v541
    %v582 = vunpack.c.l.b16 %v542
    %v583 = vunpack.c.l.b16 %v543
    %v584 = vunpack.c.l.b16 %v544
    %v585 = vunpack.c.l.b16 %v545
    %v586 = vpack.c.b16 %v571, %v570
    %v587 = vpack.c.b16 %v573, %v572
    %v588 = vpack.c.b16 %v575, %v574
    %v589 = vpack.c.b16 %v577, %v576
    %v590 = vpack.c.b16 %v579, %v578
    %v591 = vpack.c.b16 %v581, %v580
    %v592 = vpack.c.b16 %v583, %v582
    %v593 = vpack.c.b16 %v585, %v584
    %602 = vmatprep.subr.bf16.mxu0 0
    %603 = vmatpush1.bf16.msra.mxu0 %v586
    %604 = vmatprep.subr.bf16.mxu0 0
    %605 = vmatpush1.bf16.msra.mxu0 %v587
    %606 = vmatprep.subr.bf16.mxu0 0
    %607 = vmatpush1.bf16.msra.mxu0 %v588
    %608 = vmatprep.subr.bf16.mxu0 0
    %609 = vmatpush1.bf16.msra.mxu0 %v589
    %610 = vmatprep.subr.bf16.mxu0 0
    %611 = vmatpush1.bf16.msra.mxu0 %v590
    %612 = vmatprep.subr.bf16.mxu0 0
    %613 = vmatpush1.bf16.msra.mxu0 %v591
    %614 = vmatprep.subr.bf16.mxu0 0
    %615 = vmatpush1.bf16.msra.mxu0 %v592
    %616 = vmatprep.subr.bf16.mxu0 0
    %617 = vmatpush1.bf16.msra.mxu0 %v593
    %618 = vmatprep.subr.bf16.mxu0 0
    %619 = vmatpush1.bf16.msra.mxu0 0
    %620 = vmatprep.subr.bf16.mxu0 0
    %621 = vmatpush1.bf16.msra.mxu0 0
    %622 = vmatprep.subr.bf16.mxu0 0
    %623 = vmatpush1.bf16.msra.mxu0 0
    %624 = vmatprep.subr.bf16.mxu0 0
    %625 = vmatpush1.bf16.msra.mxu0 0
    %626 = vmatprep.subr.bf16.mxu0 0
    %627 = vmatpush1.bf16.msra.mxu0 0
    %628 = vmatprep.subr.bf16.mxu0 0
    %629 = vmatpush1.bf16.msra.mxu0 0
    %630 = vmatprep.subr.bf16.mxu0 0
    %631 = vmatpush1.bf16.msra.mxu0 0
    %632 = vmatprep.subr.bf16.mxu0 0
    %633 = vmatpush1.bf16.msra.mxu0 0
    %634 = vmatprep.mubr.bf16.mxu0 0
    %635 = vmatmul.mubr.bf16.gmra.mrb[0].mxu0 %v521
    %v636 = vpop.f32.mrb[0].mxu0
    %v637 = vadd.f32 %v552, %v636
    %v638 = vpop.f32.mrb[0].mxu0
    %v639 = vpop.f32.mrb[0].mxu0
    %v640 = vadd.f32 %v552, %v639
    %v641 = vpop.f32.mrb[0].mxu0
    %642 = vmatprep.mubr.bf16.mxu0 0
    %643 = vmatmul.mubr.bf16.gmra.mrb[0].mxu0 %v522
    %v644 = vpop.f32.mrb[0].mxu0
    %v645 = vadd.f32 %v552, %v644
    %v646 = vpop.f32.mrb[0].mxu0
    %v647 = vpop.f32.mrb[0].mxu0
    %v648 = vadd.f32 %v552, %v647
    %v649 = vpop.f32.mrb[0].mxu0
    %650 = vmatprep.mubr.bf16.mxu0 0
    %651 = vmatmul.mubr.bf16.gmra.mrb[0].mxu0 %v523
    %v652 = vpop.f32.mrb[0].mxu0
    %v653 = vadd.f32 %v552, %v652
    %v654 = vpop.f32.mrb[0].mxu0
    %v655 = vpop.f32.mrb[0].mxu0
    %v656 = vadd.f32 %v552, %v655
    %v657 = vpop.f32.mrb[0].mxu0
    %658 = vmatprep.mubr.bf16.mxu0 0
    %659 = vmatmul.mubr.bf16.gmra.mrb[0].mxu0 %v524
    %v660 = vpop.f32.mrb[0].mxu0
    %v661 = vadd.f32 %v552, %v660
    %v662 = vpop.f32.mrb[0].mxu0
    %v663 = vpop.f32.mrb[0].mxu0
    %v664 = vadd.f32 %v552, %v663
    %v665 = vpop.f32.mrb[0].mxu0
    %666 = vmatprep.mubr.bf16.mxu0 0
    %667 = vmatmul.mubr.bf16.gmra.mrb[0].mxu0 %v525
    %v668 = vpop.f32.mrb[0].mxu0
    %v669 = vadd.f32 %v552, %v668
    %v670 = vpop.f32.mrb[0].mxu0
    %v671 = vpop.f32.mrb[0].mxu0
    %v672 = vadd.f32 %v552, %v671
    %v673 = vpop.f32.mrb[0].mxu0
    %674 = vmatprep.mubr.bf16.mxu0 0
    %675 = vmatmul.mubr.bf16.gmra.mrb[0].mxu0 %v526
    %v676 = vpop.f32.mrb[0].mxu0
    %v677 = vadd.f32 %v552, %v676
    %v678 = vpop.f32.mrb[0].mxu0
    %v679 = vpop.f32.mrb[0].mxu0
    %v680 = vadd.f32 %v552, %v679
    %v681 = vpop.f32.mrb[0].mxu0
    %682 = vmatprep.mubr.bf16.mxu0 0
    %683 = vmatmul.mubr.bf16.gmra.mrb[0].mxu0 %v527
    %v684 = vpop.f32.mrb[0].mxu0
    %v685 = vadd.f32 %v552, %v684
    %v686 = vpop.f32.mrb[0].mxu0
    %v687 = vpop.f32.mrb[0].mxu0
    %v688 = vadd.f32 %v552, %v687
    %v689 = vpop.f32.mrb[0].mxu0
    %690 = vmatprep.mubr.bf16.mxu0 0
    %691 = vmatmul.mubr.bf16.gmra.mrb[0].mxu0 %v528
    %v692 = vpop.f32.mrb[0].mxu0
    %v693 = vadd.f32 %v552, %v692
    %v694 = vpop.f32.mrb[0].mxu0
    %v695 = vpop.f32.mrb[0].mxu0
    %v696 = vadd.f32 %v552, %v695
    %v697 = vpop.f32.mrb[0].mxu0
    %698 = vdwg.mxu0
    %v699 = vmax.f32 %v637, 0.0
    %v700 = vmax.f32 %v640, 0.0
    %v701 = vmax.f32 %v645, 0.0
    %v702 = vmax.f32 %v648, 0.0
    %v703 = vmax.f32 %v653, 0.0
    %v704 = vmax.f32 %v656, 0.0
    %v705 = vmax.f32 %v661, 0.0
    %v706 = vmax.f32 %v664, 0.0
    %v707 = vmax.f32 %v669, 0.0
    %v708 = vmax.f32 %v672, 0.0
    %v709 = vmax.f32 %v677, 0.0
    %v710 = vmax.f32 %v680, 0.0
    %v711 = vmax.f32 %v685, 0.0
    %v712 = vmax.f32 %v688, 0.0
    %v713 = vmax.f32 %v693, 0.0
    %v714 = vmax.f32 %v696, 0.0
    %v715 = vpack.c.bf16 %v700, %v699
    %v716 = vpack.c.bf16 %v702, %v701
    %v717 = vpack.c.bf16 %v704, %v703
    %v718 = vpack.c.bf16 %v706, %v705
    %v719 = vpack.c.bf16 %v708, %v707
    %v720 = vpack.c.bf16 %v710, %v709
    %v721 = vpack.c.bf16 %v712, %v711
    %v722 = vpack.c.bf16 %v714, %v713
    %s723 = scalar_lea.vmem [#allocation7], 128
    %v724 = vld [vmem:[%s723] sm:$0xf]
    %v725 = vld [vmem:[%s723 + $0x4] sm:$0xf]
    %v726 = vld [vmem:[%s723 + $0x8] sm:$0xf]
    %v727 = vld [vmem:[%s723 + $0xc] sm:$0xf]
    %v728 = vld [vmem:[%s723 + $0x10] sm:$0xf]
    %v729 = vld [vmem:[%s723 + $0x14] sm:$0xf]
    %v730 = vld [vmem:[%s723 + $0x18] sm:$0xf]
    %v731 = vld [vmem:[%s723 + $0x1c] sm:$0xf]
    %v732 = vld [vmem:[%s723 + $0x20] sm:$0xf]
    %v733 = vld [vmem:[%s723 + $0x24] sm:$0xf]
    %v734 = vld [vmem:[%s723 + $0x28] sm:$0xf]
    %v735 = vld [vmem:[%s723 + $0x2c] sm:$0xf]
    %v736 = vld [vmem:[%s723 + $0x30] sm:$0xf]
    %v737 = vld [vmem:[%s723 + $0x34] sm:$0xf]
    %v738 = vld [vmem:[%s723 + $0x38] sm:$0xf]
    %v739 = vld [vmem:[%s723 + $0x3c] sm:$0xf]
    %s740 = scalar_lea.vmem %s4, 3
    %v741 = vld [vmem:[%s740] sm:$0x1]
    %v743 = vlaneseq
    %v744 = vshrl.u32 %v743, 7
    %v745 = vsub.s32 0, %v744
    %v746 = vrot.slane %v741, %v745
    %v764 = vunpack.c.l.b16 %v724
    %v765 = vunpack.c.l.b16 %v725
    %v766 = vunpack.c.l.b16 %v726
    %v767 = vunpack.c.l.b16 %v727
    %v768 = vunpack.c.l.b16 %v728
    %v769 = vunpack.c.l.b16 %v729
    %v770 = vunpack.c.l.b16 %v730
    %v771 = vunpack.c.l.b16 %v731
    %v772 = vunpack.c.l.b16 %v732
    %v773 = vunpack.c.l.b16 %v733
    %v774 = vunpack.c.l.b16 %v734
    %v775 = vunpack.c.l.b16 %v735
    %v776 = vunpack.c.l.b16 %v736
    %v777 = vunpack.c.l.b16 %v737
    %v778 = vunpack.c.l.b16 %v738
    %v779 = vunpack.c.l.b16 %v739
    %v780 = vpack.c.b16 %v765, %v764
    %v781 = vpack.c.b16 %v767, %v766
    %v782 = vpack.c.b16 %v769, %v768
    %v783 = vpack.c.b16 %v771, %v770
    %v784 = vpack.c.b16 %v773, %v772
    %v785 = vpack.c.b16 %v775, %v774
    %v786 = vpack.c.b16 %v777, %v776
    %v787 = vpack.c.b16 %v779, %v778
    %796 = vmatprep.subr.bf16.mxu0 0
    %797 = vmatpush1.bf16.msra.mxu0 %v780
    %798 = vmatprep.subr.bf16.mxu0 0
    %799 = vmatpush1.bf16.msra.mxu0 %v781
    %800 = vmatprep.subr.bf16.mxu0 0
    %801 = vmatpush1.bf16.msra.mxu0 %v782
    %802 = vmatprep.subr.bf16.mxu0 0
    %803 = vmatpush1.bf16.msra.mxu0 %v783
    %804 = vmatprep.subr.bf16.mxu0 0
    %805 = vmatpush1.bf16.msra.mxu0 %v784
    %806 = vmatprep.subr.bf16.mxu0 0
    %807 = vmatpush1.bf16.msra.mxu0 %v785
    %808 = vmatprep.subr.bf16.mxu0 0
    %809 = vmatpush1.bf16.msra.mxu0 %v786
    %810 = vmatprep.subr.bf16.mxu0 0
    %811 = vmatpush1.bf16.msra.mxu0 %v787
    %812 = vmatprep.subr.bf16.mxu0 0
    %813 = vmatpush1.bf16.msra.mxu0 0
    %814 = vmatprep.subr.bf16.mxu0 0
    %815 = vmatpush1.bf16.msra.mxu0 0
    %816 = vmatprep.subr.bf16.mxu0 0
    %817 = vmatpush1.bf16.msra.mxu0 0
    %818 = vmatprep.subr.bf16.mxu0 0
    %819 = vmatpush1.bf16.msra.mxu0 0
    %820 = vmatprep.subr.bf16.mxu0 0
    %821 = vmatpush1.bf16.msra.mxu0 0
    %822 = vmatprep.subr.bf16.mxu0 0
    %823 = vmatpush1.bf16.msra.mxu0 0
    %824 = vmatprep.subr.bf16.mxu0 0
    %825 = vmatpush1.bf16.msra.mxu0 0
    %826 = vmatprep.subr.bf16.mxu0 0
    %827 = vmatpush1.bf16.msra.mxu0 0
    %828 = vmatprep.mubr.bf16.mxu0 0
    %829 = vmatmul.mubr.bf16.gmra.mrb[0].mxu0 %v715
    %v830 = vpop.f32.mrb[0].mxu0
    %v831 = vadd.f32 %v746, %v830
    %v832 = vpop.f32.mrb[0].mxu0
    %v833 = vpop.f32.mrb[0].mxu0
    %v834 = vadd.f32 %v746, %v833
    %v835 = vpop.f32.mrb[0].mxu0
    %836 = vmatprep.mubr.bf16.mxu0 0
    %837 = vmatmul.mubr.bf16.gmra.mrb[0].mxu0 %v716
    %v838 = vpop.f32.mrb[0].mxu0
    %v839 = vadd.f32 %v746, %v838
    %v840 = vpop.f32.mrb[0].mxu0
    %v841 = vpop.f32.mrb[0].mxu0
    %v842 = vadd.f32 %v746, %v841
    %v843 = vpop.f32.mrb[0].mxu0
    %844 = vmatprep.mubr.bf16.mxu0 0
    %845 = vmatmul.mubr.bf16.gmra.mrb[0].mxu0 %v717
    %v846 = vpop.f32.mrb[0].mxu0
    %v847 = vadd.f32 %v746, %v846
    %v848 = vpop.f32.mrb[0].mxu0
    %v849 = vpop.f32.mrb[0].mxu0
    %v850 = vadd.f32 %v746, %v849
    %v851 = vpop.f32.mrb[0].mxu0
    %852 = vmatprep.mubr.bf16.mxu0 0
    %853 = vmatmul.mubr.bf16.gmra.mrb[0].mxu0 %v718
    %v854 = vpop.f32.mrb[0].mxu0
    %v855 = vadd.f32 %v746, %v854
    %v856 = vpop.f32.mrb[0].mxu0
    %v857 = vpop.f32.mrb[0].mxu0
    %v858 = vadd.f32 %v746, %v857
    %v859 = vpop.f32.mrb[0].mxu0
    %860 = vmatprep.mubr.bf16.mxu0 0
    %861 = vmatmul.mubr.bf16.gmra.mrb[0].mxu0 %v719
    %v862 = vpop.f32.mrb[0].mxu0
    %v863 = vadd.f32 %v746, %v862
    %v864 = vpop.f32.mrb[0].mxu0
    %v865 = vpop.f32.mrb[0].mxu0
    %v866 = vadd.f32 %v746, %v865
    %v867 = vpop.f32.mrb[0].mxu0
    %868 = vmatprep.mubr.bf16.mxu0 0
    %869 = vmatmul.mubr.bf16.gmra.mrb[0].mxu0 %v720
    %v870 = vpop.f32.mrb[0].mxu0
    %v871 = vadd.f32 %v746, %v870
    %v872 = vpop.f32.mrb[0].mxu0
    %v873 = vpop.f32.mrb[0].mxu0
    %v874 = vadd.f32 %v746, %v873
    %v875 = vpop.f32.mrb[0].mxu0
    %876 = vmatprep.mubr.bf16.mxu0 0
    %877 = vmatmul.mubr.bf16.gmra.mrb[0].mxu0 %v721
    %v878 = vpop.f32.mrb[0].mxu0
    %v879 = vadd.f32 %v746, %v878
    %v880 = vpop.f32.mrb[0].mxu0
    %v881 = vpop.f32.mrb[0].mxu0
    %v882 = vadd.f32 %v746, %v881
    %v883 = vpop.f32.mrb[0].mxu0
    %884 = vmatprep.mubr.bf16.mxu0 0
    %885 = vmatmul.mubr.bf16.gmra.mrb[0].mxu0 %v722
    %v886 = vpop.f32.mrb[0].mxu0
    %v887 = vadd.f32 %v746, %v886
    %v888 = vpop.f32.mrb[0].mxu0
    %v889 = vpop.f32.mrb[0].mxu0
    %v890 = vadd.f32 %v746, %v889
    %v891 = vpop.f32.mrb[0].mxu0
    %892 = vdwg.mxu0
    %v893 = vmax.f32 %v831, 0.0
    %v894 = vmax.f32 %v834, 0.0
    %v895 = vmax.f32 %v839, 0.0
    %v896 = vmax.f32 %v842, 0.0
    %v897 = vmax.f32 %v847, 0.0
    %v898 = vmax.f32 %v850, 0.0
    %v899 = vmax.f32 %v855, 0.0
    %v900 = vmax.f32 %v858, 0.0
    %v901 = vmax.f32 %v863, 0.0
    %v902 = vmax.f32 %v866, 0.0
    %v903 = vmax.f32 %v871, 0.0
    %v904 = vmax.f32 %v874, 0.0
    %v905 = vmax.f32 %v879, 0.0
    %v906 = vmax.f32 %v882, 0.0
    %v907 = vmax.f32 %v887, 0.0
    %v908 = vmax.f32 %v890, 0.0
    %v909 = vpack.c.bf16 %v894, %v893
    %v910 = vpack.c.bf16 %v896, %v895
    %v911 = vpack.c.bf16 %v898, %v897
    %v912 = vpack.c.bf16 %v900, %v899
    %v913 = vpack.c.bf16 %v902, %v901
    %v914 = vpack.c.bf16 %v904, %v903
    %v915 = vpack.c.bf16 %v906, %v905
    %v916 = vpack.c.bf16 %v908, %v907
    %v917 = vld [vmem:[#allocation8] sm:$0xf]
    %v918 = vld [vmem:[#allocation8 + $0x4] sm:$0xf]
    %v919 = vld [vmem:[#allocation8 + $0x8] sm:$0xf]
    %v920 = vld [vmem:[#allocation8 + $0xc] sm:$0xf]
    %v921 = vld [vmem:[#allocation8 + $0x10] sm:$0xf]
    %v922 = vld [vmem:[#allocation8 + $0x14] sm:$0xf]
    %v923 = vld [vmem:[#allocation8 + $0x18] sm:$0xf]
    %v924 = vld [vmem:[#allocation8 + $0x1c] sm:$0xf]
    %v925 = vld [vmem:[#allocation8 + $0x20] sm:$0xf]
    %v926 = vld [vmem:[#allocation8 + $0x24] sm:$0xf]
    %v927 = vld [vmem:[#allocation8 + $0x28] sm:$0xf]
    %v928 = vld [vmem:[#allocation8 + $0x2c] sm:$0xf]
    %v929 = vld [vmem:[#allocation8 + $0x30] sm:$0xf]
    %v930 = vld [vmem:[#allocation8 + $0x34] sm:$0xf]
    %v931 = vld [vmem:[#allocation8 + $0x38] sm:$0xf]
    %v932 = vld [vmem:[#allocation8 + $0x3c] sm:$0xf]
    %v933 = vld [vmem:[%s5] sm:$0x1]
    %v935 = vlaneseq
    %v936 = vshrl.u32 %v935, 7
    %v937 = vsub.s32 0, %v936
    %v938 = vrot.slane %v933, %v937
    %v956 = vunpack.c.l.b16 %v917
    %v957 = vunpack.c.l.b16 %v918
    %v958 = vunpack.c.l.b16 %v919
    %v959 = vunpack.c.l.b16 %v920
    %v960 = vunpack.c.l.b16 %v921
    %v961 = vunpack.c.l.b16 %v922
    %v962 = vunpack.c.l.b16 %v923
    %v963 = vunpack.c.l.b16 %v924
    %v964 = vunpack.c.l.b16 %v925
    %v965 = vunpack.c.l.b16 %v926
    %v966 = vunpack.c.l.b16 %v927
    %v967 = vunpack.c.l.b16 %v928
    %v968 = vunpack.c.l.b16 %v929
    %v969 = vunpack.c.l.b16 %v930
    %v970 = vunpack.c.l.b16 %v931
    %v971 = vunpack.c.l.b16 %v932
    %v972 = vpack.c.b16 %v957, %v956
    %v973 = vpack.c.b16 %v959, %v958
    %v974 = vpack.c.b16 %v961, %v960
    %v975 = vpack.c.b16 %v963, %v962
    %v976 = vpack.c.b16 %v965, %v964
    %v977 = vpack.c.b16 %v967, %v966
    %v978 = vpack.c.b16 %v969, %v968
    %v979 = vpack.c.b16 %v971, %v970
    %988 = vmatprep.subr.bf16.mxu0 0
    %989 = vmatpush1.bf16.msra.mxu0 %v972
    %990 = vmatprep.subr.bf16.mxu0 0
    %991 = vmatpush1.bf16.msra.mxu0 %v973
    %992 = vmatprep.subr.bf16.mxu0 0
    %993 = vmatpush1.bf16.msra.mxu0 %v974
    %994 = vmatprep.subr.bf16.mxu0 0
    %995 = vmatpush1.bf16.msra.mxu0 %v975
    %996 = vmatprep.subr.bf16.mxu0 0
    %997 = vmatpush1.bf16.msra.mxu0 %v976
    %998 = vmatprep.subr.bf16.mxu0 0
    %999 = vmatpush1.bf16.msra.mxu0 %v977
    %1000 = vmatprep.subr.bf16.mxu0 0
    %1001 = vmatpush1.bf16.msra.mxu0 %v978
    %1002 = vmatprep.subr.bf16.mxu0 0
    %1003 = vmatpush1.bf16.msra.mxu0 %v979
    %1004 = vmatprep.subr.bf16.mxu0 0
    %1005 = vmatpush1.bf16.msra.mxu0 0
    %1006 = vmatprep.subr.bf16.mxu0 0
    %1007 = vmatpush1.bf16.msra.mxu0 0
    %1008 = vmatprep.subr.bf16.mxu0 0
    %1009 = vmatpush1.bf16.msra.mxu0 0
    %1010 = vmatprep.subr.bf16.mxu0 0
    %1011 = vmatpush1.bf16.msra.mxu0 0
    %1012 = vmatprep.subr.bf16.mxu0 0
    %1013 = vmatpush1.bf16.msra.mxu0 0
    %1014 = vmatprep.subr.bf16.mxu0 0
    %1015 = vmatpush1.bf16.msra.mxu0 0
    %1016 = vmatprep.subr.bf16.mxu0 0
    %1017 = vmatpush1.bf16.msra.mxu0 0
    %1018 = vmatprep.subr.bf16.mxu0 0
    %1019 = vmatpush1.bf16.msra.mxu0 0
    %1020 = vmatprep.mubr.bf16.mxu0 0
    %1021 = vmatmul.mubr.bf16.gmra.mrb[0].mxu0 %v909
    %v1022 = vpop.f32.mrb[0].mxu0
    %v1023 = vadd.f32 %v938, %v1022
    %v1024 = vpop.f32.mrb[0].mxu0
    %v1025 = vpop.f32.mrb[0].mxu0
    %v1026 = vadd.f32 %v938, %v1025
    %v1027 = vpop.f32.mrb[0].mxu0
    %1028 = vmatprep.mubr.bf16.mxu0 0
    %1029 = vmatmul.mubr.bf16.gmra.mrb[0].mxu0 %v910
    %v1030 = vpop.f32.mrb[0].mxu0
    %v1031 = vadd.f32 %v938, %v1030
    %v1032 = vpop.f32.mrb[0].mxu0
    %v1033 = vpop.f32.mrb[0].mxu0
    %v1034 = vadd.f32 %v938, %v1033
    %v1035 = vpop.f32.mrb[0].mxu0
    %1036 = vmatprep.mubr.bf16.mxu0 0
    %1037 = vmatmul.mubr.bf16.gmra.mrb[0].mxu0 %v911
    %v1038 = vpop.f32.mrb[0].mxu0
    %v1039 = vadd.f32 %v938, %v1038
    %v1040 = vpop.f32.mrb[0].mxu0
    %v1041 = vpop.f32.mrb[0].mxu0
    %v1042 = vadd.f32 %v938, %v1041
    %v1043 = vpop.f32.mrb[0].mxu0
    %1044 = vmatprep.mubr.bf16.mxu0 0
    %1045 = vmatmul.mubr.bf16.gmra.mrb[0].mxu0 %v912
    %v1046 = vpop.f32.mrb[0].mxu0
    %v1047 = vadd.f32 %v938, %v1046
    %v1048 = vpop.f32.mrb[0].mxu0
    %v1049 = vpop.f32.mrb[0].mxu0
    %v1050 = vadd.f32 %v938, %v1049
    %v1051 = vpop.f32.mrb[0].mxu0
    %1052 = vmatprep.mubr.bf16.mxu0 0
    %1053 = vmatmul.mubr.bf16.gmra.mrb[0].mxu0 %v913
    %v1054 = vpop.f32.mrb[0].mxu0
    %v1055 = vadd.f32 %v938, %v1054
    %v1056 = vpop.f32.mrb[0].mxu0
    %v1057 = vpop.f32.mrb[0].mxu0
    %v1058 = vadd.f32 %v938, %v1057
    %v1059 = vpop.f32.mrb[0].mxu0
    %1060 = vmatprep.mubr.bf16.mxu0 0
    %1061 = vmatmul.mubr.bf16.gmra.mrb[0].mxu0 %v914
    %v1062 = vpop.f32.mrb[0].mxu0
    %v1063 = vadd.f32 %v938, %v1062
    %v1064 = vpop.f32.mrb[0].mxu0
    %v1065 = vpop.f32.mrb[0].mxu0
    %v1066 = vadd.f32 %v938, %v1065
    %v1067 = vpop.f32.mrb[0].mxu0
    %1068 = vmatprep.mubr.bf16.mxu0 0
    %1069 = vmatmul.mubr.bf16.gmra.mrb[0].mxu0 %v915
    %v1070 = vpop.f32.mrb[0].mxu0
    %v1071 = vadd.f32 %v938, %v1070
    %v1072 = vpop.f32.mrb[0].mxu0
    %v1073 = vpop.f32.mrb[0].mxu0
    %v1074 = vadd.f32 %v938, %v1073
    %v1075 = vpop.f32.mrb[0].mxu0
    %1076 = vmatprep.mubr.bf16.mxu0 0
    %1077 = vmatmul.mubr.bf16.gmra.mrb[0].mxu0 %v916
    %v1078 = vpop.f32.mrb[0].mxu0
    %v1079 = vadd.f32 %v938, %v1078
    %v1080 = vpop.f32.mrb[0].mxu0
    %v1081 = vpop.f32.mrb[0].mxu0
    %v1082 = vadd.f32 %v938, %v1081
    %v1083 = vpop.f32.mrb[0].mxu0
    %1084 = vdwg.mxu0
    %1085 = vst [vmem:[#allocation10] sm:$0xff] %v1023
    %1086 = vst [vmem:[#allocation10 + $0x8] sm:$0xff] %v1026
    %1087 = vst [vmem:[#allocation10 + $0x10] sm:$0xff] %v1031
    %1088 = vst [vmem:[#allocation10 + $0x18] sm:$0xff] %v1034
    %1089 = vst [vmem:[#allocation10 + $0x20] sm:$0xff] %v1039
    %1090 = vst [vmem:[#allocation10 + $0x28] sm:$0xff] %v1042
    %1091 = vst [vmem:[#allocation10 + $0x30] sm:$0xff] %v1047
    %1092 = vst [vmem:[#allocation10 + $0x38] sm:$0xff] %v1050
    %1093 = vst [vmem:[#allocation10 + $0x40] sm:$0xff] %v1055
    %1094 = vst [vmem:[#allocation10 + $0x48] sm:$0xff] %v1058
    %1095 = vst [vmem:[#allocation10 + $0x50] sm:$0xff] %v1063
    %1096 = vst [vmem:[#allocation10 + $0x58] sm:$0xff] %v1066
    %1097 = vst [vmem:[#allocation10 + $0x60] sm:$0xff] %v1071
    %1098 = vst [vmem:[#allocation10 + $0x68] sm:$0xff] %v1074
    %1099 = vst [vmem:[#allocation10 + $0x70] sm:$0xff] %v1079
    %1100 = vst [vmem:[#allocation10 + $0x78] sm:$0xff] %v1082
    // Predicated region
    $region42: #{tpu_custom_call.1} parent=1 // pred_check
      _
    $region43: #{tpu_custom_call.1} parent=1 // pred_check_branch
      %1102 = sbr.rel (0) target = $region45
    $region44: #{tpu_custom_call.1} parent=1 // pred_region
      %s1104 = ssub.s32 2048, 2048
      %1105 = vsyncadd [#allocation4], %s1104
      %s1106 = sshll.u32 [#allocation10], 4
      %s1107 = int_to_ptr.vmem [resolvable:$true] %s1106
      %1112 = dma.vmem_to_hbm [thread:$0]  %s1107, 2048, %s6, [#allocation4], 128, 128, 8
    $region45: #{tpu_custom_call.1} parent=1 // pred_fallthru
      _
    // Predicated region
    $region46: #{tpu_custom_call.1} parent=1 // pred_check
      _
    $region47: #{tpu_custom_call.1} parent=1 // pred_check_branch
      %1114 = sbr.rel (0) target = $region49
    $region48: #{tpu_custom_call.1} parent=1 // pred_region
      %1115 = dma.done [#allocation4], 2048
    $region49: #{tpu_custom_call.1} parent=1 // pred_fallthru
      _
    %1116 = vsyncpa [#allocation3], 1
    %1117 = vsyncpa [#allocation6], 1
    %1118 = vsyncpa [#allocation9], 1
    %1119 = vsyncpa [#allocation4], 1

</llo_original>
